<compile_context>
chip_gen: v6e
topology: v6e:2x2x1
jax: 0.10.0
libtpu: 0.0.40
codegen_flags: <defaults>
</compile_context>

<pallas_src>
import functools

import jax
import jax.numpy as jnp
from jax.experimental import pallas as pl
from jax.experimental.pallas import tpu as pltpu  # noqa: F401  (TPU backend)

_LANE = 128  # TPU vreg lane width; output features padded to this once.


def fc_kernel(x_ref, w_ref, b_ref, o_ref):
    # x_ref: [N, D] f32 (sublane-padded internally by Mosaic when N < 8)
    # w_ref: [D, K_pad] bf16 (pre-packed transposed torch weight, zero-padded)
    # b_ref: [1, K_pad] f32
    # o_ref: [N, K_pad] f32
    # In-kernel f32->bf16 cast of the activation rides the VPU under the MXU
    # pushes; matmul accumulates in f32 on the MXU; bias add stays f32 (VPU),
    # which is the v5e-safe path (no bf16 elementwise arithmetic).
    x_bf16 = x_ref[...].astype(jnp.bfloat16)
    acc = jnp.dot(x_bf16, w_ref[...], preferred_element_type=jnp.float32)
    o_ref[...] = acc + b_ref[...]


def _round_up(v, m):
    return ((v + m - 1) // m) * m


def pack_fc_params(fc_weight, fc_bias, num_classes=10):
    """One-time packing of the fc parameters (hoisted out of the hot path).

    fc_weight: [num_classes, D] (PyTorch Linear layout)  ->  [D, K_pad] bf16
    fc_bias:   [num_classes]                             ->  [1, K_pad] f32
    Zero padding keeps the math exact for the valid K columns.
    """
    d = fc_weight.shape[1]
    k_pad = max(_LANE, _round_up(num_classes, _LANE))
    w_p = jnp.zeros((d, k_pad), dtype=jnp.bfloat16).at[:, :num_classes].set(
        fc_weight.T.astype(jnp.bfloat16))
    b_p = jnp.zeros((1, k_pad), dtype=jnp.float32).at[0, :num_classes].set(
        fc_bias.astype(jnp.float32))
    return w_p, b_p


@functools.partial(jax.jit, static_argnames=("num_classes",))
def resnet18_forward(x_nchw, w_packed, b_packed, num_classes=10):
    """Mirrors Resnet18.forward: avgpool((1,1)) -> flatten -> fc."""
    n, c, h, w = x_nchw.shape

    # AvgPool2d((1,1)) with default stride == kernel_size == (1,1) is the
    # identity (each output pixel averages exactly one input pixel).
    # torch.flatten(x, 1): row-major flatten over (C, H, W).
    x_flat = x_nchw.reshape(n, c * h * w)
    d = x_flat.shape[1]
    k_pad = w_packed.shape[1]

    cost = pl.CostEstimate(
        flops=2 * n * d * k_pad,
        transcendentals=0,
        bytes_accessed=(x_flat.size * 4 + w_packed.size * 2
                        + b_packed.size * 4 + n * k_pad * 4),
    )

    # Grid-less single-block call: block shapes equal the full array dims
    # (legal even for n < 8; Mosaic handles the internal sublane padding).
    out_pad = pl.pallas_call(
        fc_kernel,
        out_shape=jax.ShapeDtypeStruct((n, k_pad), jnp.float32),
        in_specs=[
            pl.BlockSpec((n, d), lambda: (0, 0)),
            pl.BlockSpec((d, k_pad), lambda: (0, 0)),
            pl.BlockSpec((1, k_pad), lambda: (0, 0)),
        ],
        out_specs=pl.BlockSpec((n, k_pad), lambda: (0, 0)),
        cost_estimate=cost,
    )(x_flat, w_packed, b_packed)

    # Strip the lane padding; jit fuses this slice with the surrounding ops.
    return out_pad[:, :num_classes]


if __name__ == "__main__":
    # Shapes consistent with the forward pass: flatten must yield 512 features
    # for fc = Linear(512, 10). Pick NCHW = [2, 32, 4, 4] -> 32*4*4 = 512.
    num_classes = 10
    key = jax.random.PRNGKey(0)
    kx, kw, kb = jax.random.split(key, 3)

    x = jax.random.normal(kx, (2, 32, 4, 4), dtype=jnp.float32)

    # Deterministic parameter init (PyTorch-style uniform bound 1/sqrt(fan_in)).
    bound = 1.0 / jnp.sqrt(512.0)
    fc_weight = jax.random.uniform(kw, (num_classes, 512), jnp.float32, -bound, bound)
    fc_bias = jax.random.uniform(kb, (num_classes,), jnp.float32, -bound, bound)
    assert x.reshape(x.shape[0], -1).shape[1] == fc_weight.shape[1], \
        "flattened features must match fc in_features"

    # One-time parameter packing (outside the hot path / jit).
    w_packed, b_packed = pack_fc_params(fc_weight, fc_bias, num_classes)
    w_packed, b_packed = jax.block_until_ready((w_packed, b_packed))

    out = resnet18_forward(x, w_packed, b_packed, num_classes=num_classes)
    out = jax.block_until_ready(out)

    # Pure-JAX reference check (f32 math; tolerance loosened for bf16 operands).
    ref = x.reshape(2, -1) @ fc_weight.T + fc_bias
    assert out.shape == (2, num_classes)
    assert jnp.allclose(out, ref, atol=2e-2, rtol=2e-2)

    print("KERNEL_OK")
</pallas_src>

<mosaic_0001>
module attributes {stable_mosaic.version = 11 : i64} {
  func.func @fc_kernel(%arg0: memref<2x512xf32, #tpu.memory_space<vmem>>, %arg1: memref<512x128xbf16, #tpu.memory_space<vmem>>, %arg2: memref<1x128xf32, #tpu.memory_space<vmem>>, %arg3: memref<2x128xf32, #tpu.memory_space<vmem>>) attributes {dimension_semantics = [], scalar_prefetch = 0 : i64, scratch_operands = 0 : i64, tpu.core_type = #tpu.core_type<tc>} {
    %c0 = arith.constant 0 : index
    %c0_0 = arith.constant 0 : index
    %0 = vector.load %arg0[%c0, %c0_0] : memref<2x512xf32, #tpu.memory_space<vmem>>, vector<2x512xf32>
    %1 = arith.truncf %0 : vector<2x512xf32> to vector<2x512xbf16>
    %c0_1 = arith.constant 0 : index
    %c0_2 = arith.constant 0 : index
    %2 = vector.load %arg1[%c0_1, %c0_2] : memref<512x128xbf16, #tpu.memory_space<vmem>>, vector<512x128xbf16>
    %cst = arith.constant dense<0.000000e+00> : vector<2x128xf32>
    %3 = tpu.matmul %1, %2, %cst {dimension_numbers = #tpu.dot_dimension_numbers<[1], [0], [0], [1], [0, 0, 1, 1], [], []>} : vector<2x512xbf16>, vector<512x128xbf16>, vector<2x128xf32> -> vector<2x128xf32>
    %c0_3 = arith.constant 0 : index
    %c0_4 = arith.constant 0 : index
    %4 = vector.load %arg2[%c0_3, %c0_4] : memref<1x128xf32, #tpu.memory_space<vmem>>, vector<1x128xf32>
    %5 = vector.broadcast %4 : vector<1x128xf32> to vector<2x128xf32>
    %6 = arith.addf %3, %5 : vector<2x128xf32>
    %c0_5 = arith.constant 0 : index
    %c0_6 = arith.constant 0 : index
    %7 = vector.load %arg3[%c0_5, %c0_6] : memref<2x128xf32, #tpu.memory_space<vmem>>, vector<2x128xf32>
    tpu.vector_store %arg3[%c0_5, %c0_6], %6 {strides = array<i32>} : memref<2x128xf32, #tpu.memory_space<vmem>>, vector<2x128xf32>,
    return
  }
}

</mosaic_0001>

<llo_original>
// kernel: resnet18_forward.1
$region0: #{resnet18_forward.1}
  #allocation0 [shape = 'u32[]', space=smem, size = 0x4, offset = 0x4, fixed_abs, tag = 'smem constant byte address 0x4 - core index']
  #allocation1 [shape = 'u32[144,128]{1,0:T(1,128)}', space=vmem, size = 0x12000, scoped, tag = 'internal scratch']
  %s0 = inlined_call_operand.vmem [shape: f32[2,512], index: 0, kind: input, shape index: {}]
  %s1 = inlined_call_operand.vmem [shape: bf16[512,128], index: 1, kind: input, shape index: {}]
  %s2 = inlined_call_operand.vmem [shape: f32[1,128], index: 2, kind: input, shape index: {}]
  %s3 = inlined_call_operand.hbm [shape: f32[2,128], index: 3, kind: output, shape index: {}]
  %s4 = sld [smem:[#allocation0]]
  $region22: #{resnet18_forward.1} parent=0
    _
  %s6 = ssub.s32 1, %s4
  %s7 = scalar_select 0, %s6, %s4
  $region1: #{resnet18_forward.1} parent=0
    #allocation2 [shape = 'u8[1024]{0}', space=vmem, size = 0x400, scoped, tag = 'output window, operand 0, single buffered']
    #allocation3 [shape = 's32[1]{0}', space=sflag, size = 0x4, scoped, tag = 'scoped memory for resnet18_forward.1']
    %8 = vsyncpa [#allocation3], 0
    // Predicated region
    $region2: #{resnet18_forward.1} parent=1 // pred_check
      _
    $region3: #{resnet18_forward.1} parent=1 // pred_check_branch
      %10 = sbr.rel (0) target = $region5
    $region4: #{resnet18_forward.1} parent=1 // pred_region
      _
    $region5: #{resnet18_forward.1} parent=1 // pred_fallthru
      _
    // Predicated region
    $region6: #{resnet18_forward.1} parent=1 // pred_check
      _
    $region7: #{resnet18_forward.1} parent=1 // pred_check_branch
      %12 = sbr.rel (0) target = $region9
    $region8: #{resnet18_forward.1} parent=1 // pred_region
      _
    $region9: #{resnet18_forward.1} parent=1 // pred_fallthru
      _
    // Predicated region
    $region10: #{resnet18_forward.1} parent=1 // pred_check
      _
    $region11: #{resnet18_forward.1} parent=1 // pred_check_branch
      %14 = sbr.rel (0) target = $region13
    $region12: #{resnet18_forward.1} parent=1 // pred_region
      _
    $region13: #{resnet18_forward.1} parent=1 // pred_fallthru
      _
    %v16 = vld [vmem:[%s0] sm:$0xff]
    %v18 = vcombine.high %v16, %v16
    %v20 = vunpack.c.l.s4 1983009808
    %v21 = vunpack.c.0.s8 %v20
    %v22 = vlaneseq
    %v23 = vshrl.u32 %v22, 7
    %v24 = vsub.s32 %v21, %v23
    %v25 = vrot.slane %v16, %v24
    %v27 = vunpack.c.l.s4 1983009808
    %v28 = vunpack.c.0.s8 %v27
    %v29 = vlaneseq
    %v30 = vshrl.u32 %v29, 7
    %v31 = vsub.s32 %v28, %v30
    %v32 = vrot.slane %v18, %v31
    %v33 = vcombine.high %v25, %v25
    %v34 = vcombine.high %v32, %v32
    %v39 = vpack.c.bf16 %v25, %v25
    %v40 = vpack.c.bf16 %v33, %v33
    %v41 = vpack.c.bf16 %v32, %v32
    %v42 = vpack.c.bf16 %v34, %v34
    %v43 = vld [vmem:[%s1] sm:$0xf]
    %v44 = vld [vmem:[%s1 + $0x4] sm:$0xf]
    %v45 = vld [vmem:[%s1 + $0x8] sm:$0xf]
    %v46 = vld [vmem:[%s1 + $0xc] sm:$0xf]
    %v47 = vld [vmem:[%s1 + $0x10] sm:$0xf]
    %v48 = vld [vmem:[%s1 + $0x14] sm:$0xf]
    %v49 = vld [vmem:[%s1 + $0x18] sm:$0xf]
    %v50 = vld [vmem:[%s1 + $0x1c] sm:$0xf]
    %v51 = vld [vmem:[%s1 + $0x20] sm:$0xf]
    %v52 = vld [vmem:[%s1 + $0x24] sm:$0xf]
    %v53 = vld [vmem:[%s1 + $0x28] sm:$0xf]
    %v54 = vld [vmem:[%s1 + $0x2c] sm:$0xf]
    %v55 = vld [vmem:[%s1 + $0x30] sm:$0xf]
    %v56 = vld [vmem:[%s1 + $0x34] sm:$0xf]
    %v57 = vld [vmem:[%s1 + $0x38] sm:$0xf]
    %v58 = vld [vmem:[%s1 + $0x3c] sm:$0xf]
    %v59 = vld [vmem:[%s1 + $0x40] sm:$0xf]
    %v60 = vld [vmem:[%s1 + $0x44] sm:$0xf]
    %v61 = vld [vmem:[%s1 + $0x48] sm:$0xf]
    %v62 = vld [vmem:[%s1 + $0x4c] sm:$0xf]
    %v63 = vld [vmem:[%s1 + $0x50] sm:$0xf]
    %v64 = vld [vmem:[%s1 + $0x54] sm:$0xf]
    %v65 = vld [vmem:[%s1 + $0x58] sm:$0xf]
    %v66 = vld [vmem:[%s1 + $0x5c] sm:$0xf]
    %v67 = vld [vmem:[%s1 + $0x60] sm:$0xf]
    %v68 = vld [vmem:[%s1 + $0x64] sm:$0xf]
    %v69 = vld [vmem:[%s1 + $0x68] sm:$0xf]
    %v70 = vld [vmem:[%s1 + $0x6c] sm:$0xf]
    %v71 = vld [vmem:[%s1 + $0x70] sm:$0xf]
    %v72 = vld [vmem:[%s1 + $0x74] sm:$0xf]
    %v73 = vld [vmem:[%s1 + $0x78] sm:$0xf]
    %v74 = vld [vmem:[%s1 + $0x7c] sm:$0xf]
    %v75 = vld [vmem:[%s1 + $0x80] sm:$0xf]
    %v76 = vld [vmem:[%s1 + $0x84] sm:$0xf]
    %v77 = vld [vmem:[%s1 + $0x88] sm:$0xf]
    %v78 = vld [vmem:[%s1 + $0x8c] sm:$0xf]
    %v79 = vld [vmem:[%s1 + $0x90] sm:$0xf]
    %v80 = vld [vmem:[%s1 + $0x94] sm:$0xf]
    %v81 = vld [vmem:[%s1 + $0x98] sm:$0xf]
    %v82 = vld [vmem:[%s1 + $0x9c] sm:$0xf]
    %v83 = vld [vmem:[%s1 + $0xa0] sm:$0xf]
    %v84 = vld [vmem:[%s1 + $0xa4] sm:$0xf]
    %v85 = vld [vmem:[%s1 + $0xa8] sm:$0xf]
    %v86 = vld [vmem:[%s1 + $0xac] sm:$0xf]
    %v87 = vld [vmem:[%s1 + $0xb0] sm:$0xf]
    %v88 = vld [vmem:[%s1 + $0xb4] sm:$0xf]
    %v89 = vld [vmem:[%s1 + $0xb8] sm:$0xf]
    %v90 = vld [vmem:[%s1 + $0xbc] sm:$0xf]
    %v91 = vld [vmem:[%s1 + $0xc0] sm:$0xf]
    %v92 = vld [vmem:[%s1 + $0xc4] sm:$0xf]
    %v93 = vld [vmem:[%s1 + $0xc8] sm:$0xf]
    %v94 = vld [vmem:[%s1 + $0xcc] sm:$0xf]
    %v95 = vld [vmem:[%s1 + $0xd0] sm:$0xf]
    %v96 = vld [vmem:[%s1 + $0xd4] sm:$0xf]
    %v97 = vld [vmem:[%s1 + $0xd8] sm:$0xf]
    %v98 = vld [vmem:[%s1 + $0xdc] sm:$0xf]
    %v99 = vld [vmem:[%s1 + $0xe0] sm:$0xf]
    %v100 = vld [vmem:[%s1 + $0xe4] sm:$0xf]
    %v101 = vld [vmem:[%s1 + $0xe8] sm:$0xf]
    %v102 = vld [vmem:[%s1 + $0xec] sm:$0xf]
    %v103 = vld [vmem:[%s1 + $0xf0] sm:$0xf]
    %v104 = vld [vmem:[%s1 + $0xf4] sm:$0xf]
    %v105 = vld [vmem:[%s1 + $0xf8] sm:$0xf]
    %v106 = vld [vmem:[%s1 + $0xfc] sm:$0xf]
    %v107 = vld [vmem:[%s2] sm:$0x1]
    %v109 = vlaneseq
    %v110 = vshrl.u32 %v109, 7
    %v111 = vsub.s32 0, %v110
    %v112 = vrot.slane %v107, %v111
    %v178 = vunpack.c.l.b16 %v43
    %v179 = vunpack.c.l.b16 %v44
    %v180 = vunpack.c.l.b16 %v45
    %v181 = vunpack.c.l.b16 %v46
    %v182 = vunpack.c.l.b16 %v47
    %v183 = vunpack.c.l.b16 %v48
    %v184 = vunpack.c.l.b16 %v49
    %v185 = vunpack.c.l.b16 %v50
    %v186 = vunpack.c.l.b16 %v51
    %v187 = vunpack.c.l.b16 %v52
    %v188 = vunpack.c.l.b16 %v53
    %v189 = vunpack.c.l.b16 %v54
    %v190 = vunpack.c.l.b16 %v55
    %v191 = vunpack.c.l.b16 %v56
    %v192 = vunpack.c.l.b16 %v57
    %v193 = vunpack.c.l.b16 %v58
    %v194 = vunpack.c.l.b16 %v59
    %v195 = vunpack.c.l.b16 %v60
    %v196 = vunpack.c.l.b16 %v61
    %v197 = vunpack.c.l.b16 %v62
    %v198 = vunpack.c.l.b16 %v63
    %v199 = vunpack.c.l.b16 %v64
    %v200 = vunpack.c.l.b16 %v65
    %v201 = vunpack.c.l.b16 %v66
    %v202 = vunpack.c.l.b16 %v67
    %v203 = vunpack.c.l.b16 %v68
    %v204 = vunpack.c.l.b16 %v69
    %v205 = vunpack.c.l.b16 %v70
    %v206 = vunpack.c.l.b16 %v71
    %v207 = vunpack.c.l.b16 %v72
    %v208 = vunpack.c.l.b16 %v73
    %v209 = vunpack.c.l.b16 %v74
    %v210 = vunpack.c.l.b16 %v75
    %v211 = vunpack.c.l.b16 %v76
    %v212 = vunpack.c.l.b16 %v77
    %v213 = vunpack.c.l.b16 %v78
    %v214 = vunpack.c.l.b16 %v79
    %v215 = vunpack.c.l.b16 %v80
    %v216 = vunpack.c.l.b16 %v81
    %v217 = vunpack.c.l.b16 %v82
    %v218 = vunpack.c.l.b16 %v83
    %v219 = vunpack.c.l.b16 %v84
    %v220 = vunpack.c.l.b16 %v85
    %v221 = vunpack.c.l.b16 %v86
    %v222 = vunpack.c.l.b16 %v87
    %v223 = vunpack.c.l.b16 %v88
    %v224 = vunpack.c.l.b16 %v89
    %v225 = vunpack.c.l.b16 %v90
    %v226 = vunpack.c.l.b16 %v91
    %v227 = vunpack.c.l.b16 %v92
    %v228 = vunpack.c.l.b16 %v93
    %v229 = vunpack.c.l.b16 %v94
    %v230 = vunpack.c.l.b16 %v95
    %v231 = vunpack.c.l.b16 %v96
    %v232 = vunpack.c.l.b16 %v97
    %v233 = vunpack.c.l.b16 %v98
    %v234 = vunpack.c.l.b16 %v99
    %v235 = vunpack.c.l.b16 %v100
    %v236 = vunpack.c.l.b16 %v101
    %v237 = vunpack.c.l.b16 %v102
    %v238 = vunpack.c.l.b16 %v103
    %v239 = vunpack.c.l.b16 %v104
    %v240 = vunpack.c.l.b16 %v105
    %v241 = vunpack.c.l.b16 %v106
    %v242 = vpack.c.b16 %v179, %v178
    %v243 = vpack.c.b16 %v181, %v180
    %v244 = vpack.c.b16 %v183, %v182
    %v245 = vpack.c.b16 %v185, %v184
    %v246 = vpack.c.b16 %v187, %v186
    %v247 = vpack.c.b16 %v189, %v188
    %v248 = vpack.c.b16 %v191, %v190
    %v249 = vpack.c.b16 %v193, %v192
    %v250 = vpack.c.b16 %v195, %v194
    %v251 = vpack.c.b16 %v197, %v196
    %v252 = vpack.c.b16 %v199, %v198
    %v253 = vpack.c.b16 %v201, %v200
    %v254 = vpack.c.b16 %v203, %v202
    %v255 = vpack.c.b16 %v205, %v204
    %v256 = vpack.c.b16 %v207, %v206
    %v257 = vpack.c.b16 %v209, %v208
    %v258 = vpack.c.b16 %v211, %v210
    %v259 = vpack.c.b16 %v213, %v212
    %v260 = vpack.c.b16 %v215, %v214
    %v261 = vpack.c.b16 %v217, %v216
    %v262 = vpack.c.b16 %v219, %v218
    %v263 = vpack.c.b16 %v221, %v220
    %v264 = vpack.c.b16 %v223, %v222
    %v265 = vpack.c.b16 %v225, %v224
    %v266 = vpack.c.b16 %v227, %v226
    %v267 = vpack.c.b16 %v229, %v228
    %v268 = vpack.c.b16 %v231, %v230
    %v269 = vpack.c.b16 %v233, %v232
    %v270 = vpack.c.b16 %v235, %v234
    %v271 = vpack.c.b16 %v237, %v236
    %v272 = vpack.c.b16 %v239, %v238
    %v273 = vpack.c.b16 %v241, %v240
    %306 = vmatprep.subr.bf16.mxu0 0
    %307 = vmatpush1.bf16.msra.mxu0 %v249
    %308 = vmatprep.subr.bf16.mxu0 0
    %309 = vmatpush1.bf16.msra.mxu0 %v248
    %310 = vmatprep.subr.bf16.mxu0 0
    %311 = vmatpush1.bf16.msra.mxu0 %v247
    %312 = vmatprep.subr.bf16.mxu0 0
    %313 = vmatpush1.bf16.msra.mxu0 %v246
    %314 = vmatprep.subr.bf16.mxu0 0
    %315 = vmatpush1.bf16.msra.mxu0 %v245
    %316 = vmatprep.subr.bf16.mxu0 0
    %317 = vmatpush1.bf16.msra.mxu0 %v244
    %318 = vmatprep.subr.bf16.mxu0 0
    %319 = vmatpush1.bf16.msra.mxu0 %v243
    %320 = vmatprep.subr.bf16.mxu0 0
    %321 = vmatpush1.bf16.msra.mxu0 %v242
    %322 = vmatprep.subr.bf16.mxu0 0
    %323 = vmatpush2.bf16.msra.mxu0 %v257
    %324 = vmatprep.subr.bf16.mxu0 0
    %325 = vmatpush2.bf16.msra.mxu0 %v256
    %326 = vmatprep.subr.bf16.mxu0 0
    %327 = vmatpush2.bf16.msra.mxu0 %v255
    %328 = vmatprep.subr.bf16.mxu0 0
    %329 = vmatpush2.bf16.msra.mxu0 %v254
    %330 = vmatprep.subr.bf16.mxu0 0
    %331 = vmatpush2.bf16.msra.mxu0 %v253
    %332 = vmatprep.subr.bf16.mxu0 0
    %333 = vmatpush2.bf16.msra.mxu0 %v252
    %334 = vmatprep.subr.bf16.mxu0 0
    %335 = vmatpush2.bf16.msra.mxu0 %v251
    %336 = vmatprep.subr.bf16.mxu0 0
    %337 = vmatpush2.bf16.msra.mxu0 %v250
    %338 = vmatprep.mubr.bf16.mxu0 %v40
    %339 = vmatmul.mubr.bf16.gmra.mxu0 %v39
    %v340 = vpop.f32.mrf.mxu0
    %v341 = vadd.f32 %v112, %v340
    %v342 = vpop.f32.mrf.mxu0
    %v343 = vpop.f32.mrf.mxu0
    %v344 = vpop.f32.mrf.mxu0
    %345 = vdwg.mxu0
    %346 = vmatprep.subr.bf16.mxu0 0
    %347 = vmatpush1.bf16.msra.mxu0 %v265
    %348 = vmatprep.subr.bf16.mxu0 0
    %349 = vmatpush1.bf16.msra.mxu0 %v264
    %350 = vmatprep.subr.bf16.mxu0 0
    %351 = vmatpush1.bf16.msra.mxu0 %v263
    %352 = vmatprep.subr.bf16.mxu0 0
    %353 = vmatpush1.bf16.msra.mxu0 %v262
    %354 = vmatprep.subr.bf16.mxu0 0
    %355 = vmatpush1.bf16.msra.mxu0 %v261
    %356 = vmatprep.subr.bf16.mxu0 0
    %357 = vmatpush1.bf16.msra.mxu0 %v260
    %358 = vmatprep.subr.bf16.mxu0 0
    %359 = vmatpush1.bf16.msra.mxu0 %v259
    %360 = vmatprep.subr.bf16.mxu0 0
    %361 = vmatpush1.bf16.msra.mxu0 %v258
    %362 = vmatprep.subr.bf16.mxu0 0
    %363 = vmatpush2.bf16.msra.mxu0 %v273
    %364 = vmatprep.subr.bf16.mxu0 0
    %365 = vmatpush2.bf16.msra.mxu0 %v272
    %366 = vmatprep.subr.bf16.mxu0 0
    %367 = vmatpush2.bf16.msra.mxu0 %v271
    %368 = vmatprep.subr.bf16.mxu0 0
    %369 = vmatpush2.bf16.msra.mxu0 %v270
    %370 = vmatprep.subr.bf16.mxu0 0
    %371 = vmatpush2.bf16.msra.mxu0 %v269
    %372 = vmatprep.subr.bf16.mxu0 0
    %373 = vmatpush2.bf16.msra.mxu0 %v268
    %374 = vmatprep.subr.bf16.mxu0 0
    %375 = vmatpush2.bf16.msra.mxu0 %v267
    %376 = vmatprep.subr.bf16.mxu0 0
    %377 = vmatpush2.bf16.msra.mxu0 %v266
    %378 = vmatprep.mubr.bf16.mxu0 %v42
    %379 = vmatmul.mubr.bf16.gmra.mxu0 %v41
    %v380 = vpop.f32.mrf.mxu0
    %v381 = vadd.f32 %v341, %v380
    %v382 = vpop.f32.mrf.mxu0
    %v383 = vpop.f32.mrf.mxu0
    %v384 = vpop.f32.mrf.mxu0
    %385 = vdwg.mxu0
    %386 = vst [vmem:[#allocation2] sm:$0x3] %v381
    // Predicated region
    $region14: #{resnet18_forward.1} parent=1 // pred_check
      _
    $region15: #{resnet18_forward.1} parent=1 // pred_check_branch
      %388 = sbr.rel (0) target = $region17
    $region16: #{resnet18_forward.1} parent=1 // pred_region
      %s390 = ssub.s32 32, 32
      %391 = vsyncadd [#allocation3], %s390
      %s393 = sshll.u32 [#allocation2], 4
      %s394 = int_to_ptr.vmem [resolvable:$true] %s393
      %396 = dma.vmem_to_hbm [thread:$0]  %s394, 32, %s3, [#allocation3]
    $region17: #{resnet18_forward.1} parent=1 // pred_fallthru
      _
    // Predicated region
    $region18: #{resnet18_forward.1} parent=1 // pred_check
      _
    $region19: #{resnet18_forward.1} parent=1 // pred_check_branch
      %398 = sbr.rel (0) target = $region21
    $region20: #{resnet18_forward.1} parent=1 // pred_region
      %399 = dma.done [#allocation3], 32
    $region21: #{resnet18_forward.1} parent=1 // pred_fallthru
      _
    %400 = vsyncpa [#allocation3], 1

</llo_original>
